<compile_context>
chip_gen: v6e
topology: v6e:2x2x1
jax: 0.10.0
libtpu: 0.0.40
codegen_flags: <defaults>
</compile_context>

<pallas_src>
import math
import functools

import numpy as np
import jax
import jax.numpy as jnp
from jax import lax
from jax.experimental import pallas as pl
from jax.experimental.pallas import tpu as pltpu


# ---------------------------------------------------------------------------
# Small helpers
# ---------------------------------------------------------------------------

def _pick_row_tile(n, target):
    """Row-tile size: full dim if it fits in one block, else a multiple of 8."""
    n = int(n)
    target = int(target)
    if n <= target:
        return n
    return max(8, (target // 8) * 8)


# ---------------------------------------------------------------------------
# Row-tiled linear projection kernels (value_proj / output_proj)
# Weights are pre-cast to the MXU compute dtype at the call site: resident block,
# no per-grid-step VALU cast, half the weight DMA.
# ---------------------------------------------------------------------------

def _linear_kernel(x_ref, w_ref, b_ref, o_ref, *, compute_dtype):
    x = x_ref[...].astype(compute_dtype)
    y = jnp.dot(x, w_ref[...], preferred_element_type=jnp.float32) + b_ref[...]
    o_ref[...] = y.astype(o_ref.dtype)


def _linear_dual_kernel(x_ref, w_ref, b_ref, o_ref, o_lo_ref, *, compute_dtype):
    x = x_ref[...].astype(compute_dtype)
    y = jnp.dot(x, w_ref[...], preferred_element_type=jnp.float32) + b_ref[...]
    o_ref[...] = y.astype(o_ref.dtype)        # f32 new_value (module output)
    o_lo_ref[...] = y.astype(o_lo_ref.dtype)  # compute-dtype copy for the deform core


def linear_pallas(x, w, b, *, out_dtype=jnp.float32, compute_dtype=jnp.bfloat16,
                  tile_rows=512):
    """x: [N, Din], w: [Din, Dout] (f32, cast here), b: [Dout] -> [N, Dout] out_dtype."""
    N, Din = x.shape
    Dout = w.shape[1]
    tn = _pick_row_tile(N, tile_rows)
    kernel = functools.partial(_linear_kernel, compute_dtype=compute_dtype)
    return pl.pallas_call(
        kernel,
        out_shape=jax.ShapeDtypeStruct((N, Dout), out_dtype),
        grid=(pl.cdiv(N, tn),),
        in_specs=[pl.BlockSpec((tn, Din), lambda i: (i, 0)),
                  pl.BlockSpec((Din, Dout), lambda i: (0, 0)),
                  pl.BlockSpec((1, Dout), lambda i: (0, 0))],
        out_specs=pl.BlockSpec((tn, Dout), lambda i: (i, 0)),
        compiler_params=pltpu.CompilerParams(dimension_semantics=("parallel",)),
    )(x, w.astype(compute_dtype), b.reshape(1, Dout))


def linear_dual_pallas(x, w, b, *, compute_dtype=jnp.bfloat16, tile_rows=512):
    """Same as linear_pallas but returns (f32 output, compute_dtype output) in one pass."""
    N, Din = x.shape
    Dout = w.shape[1]
    tn = _pick_row_tile(N, tile_rows)
    kernel = functools.partial(_linear_dual_kernel, compute_dtype=compute_dtype)
    return pl.pallas_call(
        kernel,
        out_shape=(jax.ShapeDtypeStruct((N, Dout), jnp.float32),
                   jax.ShapeDtypeStruct((N, Dout), compute_dtype)),
        grid=(pl.cdiv(N, tn),),
        in_specs=[pl.BlockSpec((tn, Din), lambda i: (i, 0)),
                  pl.BlockSpec((Din, Dout), lambda i: (0, 0)),
                  pl.BlockSpec((1, Dout), lambda i: (0, 0))],
        out_specs=(pl.BlockSpec((tn, Dout), lambda i: (i, 0)),
                   pl.BlockSpec((tn, Dout), lambda i: (i, 0))),
        compiler_params=pltpu.CompilerParams(dimension_semantics=("parallel",)),
    )(x, w.astype(compute_dtype), b.reshape(1, Dout))


# ---------------------------------------------------------------------------
# Fused sampling-offset + attention-weight projection (+ per-head softmax)
# The query activations are read from HBM exactly once; the softmaxed attention
# weights are assembled full-width so the store is a single lane-dense vst.
# ---------------------------------------------------------------------------

def _qproj_kernel(x_ref, wso_ref, bso_ref, waw_ref, baw_ref, so_ref, aw_ref,
                  *, n_heads, lp, compute_dtype):
    x = x_ref[...].astype(compute_dtype)

    so = jnp.dot(x, wso_ref[...], preferred_element_type=jnp.float32) + bso_ref[...]
    so_ref[...] = so.astype(so_ref.dtype)

    logits = jnp.dot(x, waw_ref[...], preferred_element_type=jnp.float32) + baw_ref[...]
    # Per-head softmax over lp contiguous columns.  A row-global max is mathematically
    # identical to the per-head max; per-head sums are scattered back full-width with a
    # column-id mask so the final store is one full-width vst (no masked narrow stores).
    K = n_heads * lp
    gmax = jnp.max(logits, axis=-1, keepdims=True)
    e = jnp.exp(logits - gmax)
    col = lax.broadcasted_iota(jnp.int32, (1, K), 1)
    denom = jnp.zeros_like(e)
    for m in range(n_heads):
        s_m = jnp.sum(e[:, m * lp:(m + 1) * lp], axis=-1, keepdims=True)   # [tn, 1]
        in_head = (col >= m * lp) & (col < (m + 1) * lp)                    # [1, K]
        denom = denom + jnp.where(in_head, s_m, 0.0)
    aw_ref[...] = (e / denom).astype(aw_ref.dtype)


def qproj_pallas(x, w_so, b_so, w_aw, b_aw, *, n_heads, lp,
                 compute_dtype=jnp.bfloat16, tile_rows=512):
    """x: [N, C] -> (sampling_offsets [N, nh*L*P*2], softmaxed attention weights [N, nh*L*P])."""
    N, Din = x.shape
    so_dim = w_so.shape[1]
    aw_dim = w_aw.shape[1]
    tn = _pick_row_tile(N, tile_rows)
    kernel = functools.partial(_qproj_kernel, n_heads=n_heads, lp=lp,
                               compute_dtype=compute_dtype)
    return pl.pallas_call(
        kernel,
        out_shape=(jax.ShapeDtypeStruct((N, so_dim), jnp.float32),
                   jax.ShapeDtypeStruct((N, aw_dim), jnp.float32)),
        grid=(pl.cdiv(N, tn),),
        in_specs=[pl.BlockSpec((tn, Din), lambda i: (i, 0)),
                  pl.BlockSpec((Din, so_dim), lambda i: (0, 0)),
                  pl.BlockSpec((1, so_dim), lambda i: (0, 0)),
                  pl.BlockSpec((Din, aw_dim), lambda i: (0, 0)),
                  pl.BlockSpec((1, aw_dim), lambda i: (0, 0))],
        out_specs=(pl.BlockSpec((tn, so_dim), lambda i: (i, 0)),
                   pl.BlockSpec((tn, aw_dim), lambda i: (i, 0))),
        compiler_params=pltpu.CompilerParams(dimension_semantics=("parallel",)),
    )(x, w_so.astype(compute_dtype), b_so.reshape(1, so_dim),
      w_aw.astype(compute_dtype), b_aw.reshape(1, aw_dim))


# ---------------------------------------------------------------------------
# Deformable-attention core: (batch, Lq-tile, Lv-tile) grid, per-level 2D scatter
# ---------------------------------------------------------------------------

def _deform_core_kernel(lvl_ref, value_ref, idx_ref, w_ref, o_ref, acc_ref,
                        *, n_heads, d_head, p4, tile_lv, compute_dtype):
    # lvl_ref (tile -> level map) is only consumed by the index_maps.
    del lvl_ref
    lv = pl.program_id(2)

    @pl.when(lv == 0)
    def _init():
        acc_ref[...] = jnp.zeros_like(acc_ref)

    tile_base = lv * tile_lv             # first padded-value row held by this Lv tile
    v = value_ref[0]                     # [tile_lv, C]   compute_dtype
    idx = idx_ref[0, 0]                  # [tq, nh*p4]    int32, padded-global value rows
    wts = w_ref[0, 0].astype(jnp.float32)  # [tq, nh*p4]  stored bf16; corner sums kept in f32
    local = idx - tile_base              # in-tile row index (outside [0, tile_lv) -> no match)
    tq = idx.shape[0]

    # Single 2D iota hoisted out of the head/corner loops.  The dense sampling matrix `a`
    # is built by an unrolled corner loop on [tq, tile_lv] planes only: the previous
    # [tq, p4, tile_lv] one-hot (rebuilt per head) forced VMEM spills and saturated the VALU.
    pos = lax.broadcasted_iota(jnp.int32, (tq, tile_lv), 1)

    for m in range(n_heads):
        a = None
        for k in range(p4):
            col = m * p4 + k
            hit = local[:, col:col + 1] == pos                           # [tq, tile_lv]
            contrib = jnp.where(hit, wts[:, col:col + 1], 0.0)           # f32 accumulation
            a = contrib if a is None else a + contrib
        # TODO(synk): 3/4 of the corner compares could move to the XLU via pltpu.roll of the
        # top-left one-hot by (1, W_l, W_l+1) per level; kept on the VALU for correctness.
        vm = v[:, m * d_head:(m + 1) * d_head]                           # [tile_lv, dh]
        csl = slice(m * d_head, (m + 1) * d_head)
        # TODO(synk): per-head slice update is a lane-masked store when d_head < 128;
        # revisit (concat heads / transposed-matmul variant) after re-profiling post scatter fix.
        acc_ref[:, csl] = acc_ref[:, csl] + jnp.dot(
            a.astype(compute_dtype), vm, preferred_element_type=jnp.float32)

    @pl.when(lv == pl.num_programs(2) - 1)
    def _store():
        o_ref[0] = acc_ref[...].astype(o_ref.dtype)


def deform_core_pallas(tile_level, value_padded, idx_k, w_k, *,
                       n_heads, d_head, p4, tile_lv, tq, compute_dtype):
    """
    tile_level  : int32 [n_lv_tiles]   (level owning each Lv tile; scalar-prefetched)
    value_padded: [B, Lv_pad, C]       per-level padded to a multiple of tile_lv, compute_dtype
    idx_k       : [B, L, Lq_pad, nh*P*4]  int32
    w_k         : [B, L, Lq_pad, nh*P*4]  compute_dtype (attention * bilinear * valid)
    returns compute_dtype [B, Lq_pad, C]
    """
    B, Lv_pad, C = value_padded.shape
    _, _, Lq_pad, Kh = idx_k.shape
    n_lv_tiles = Lv_pad // tile_lv
    n_lq_tiles = Lq_pad // tq

    kernel = functools.partial(_deform_core_kernel, n_heads=n_heads, d_head=d_head,
                               p4=p4, tile_lv=tile_lv, compute_dtype=compute_dtype)
    grid_spec = pltpu.PrefetchScalarGridSpec(
        num_scalar_prefetch=1,
        grid=(B, n_lq_tiles, n_lv_tiles),
        in_specs=[
            pl.BlockSpec((1, tile_lv, C), lambda b, q, l, lvl: (b, l, 0)),
            pl.BlockSpec((1, 1, tq, Kh), lambda b, q, l, lvl: (b, lvl[l], q, 0)),
            pl.BlockSpec((1, 1, tq, Kh), lambda b, q, l, lvl: (b, lvl[l], q, 0)),
        ],
        out_specs=pl.BlockSpec((1, tq, C), lambda b, q, l, lvl: (b, q, 0)),
        scratch_shapes=[pltpu.VMEM((tq, C), jnp.float32)],
    )
    return pl.pallas_call(
        kernel,
        out_shape=jax.ShapeDtypeStruct((B, Lq_pad, C), compute_dtype),
        grid_spec=grid_spec,
        compiler_params=pltpu.CompilerParams(
            dimension_semantics=("parallel", "parallel", "arbitrary")),
    )(jnp.asarray(tile_level, jnp.int32), value_padded, idx_k, w_k)


# ---------------------------------------------------------------------------
# Glue: bilinear corner indices / weights and per-level padding (plain JAX)
# ---------------------------------------------------------------------------

def _bilinear_corner_plan(sampling_locations, attention_weights, input_shapes, level_start):
    """
    sampling_locations: [B, Lq, nh, L, P, 2]  (x, y) in [0, 1]
    attention_weights : [B, Lq, nh, L, P]
    input_shapes      : np [L, 2] as (W, H);  level_start: np [L] row offsets in the value layout
    Returns idx6 int32, w6 f32 of shape [B, Lq, nh, L, P, 4].
    Semantics match F.grid_sample(mode='bilinear', padding_mode='zeros', align_corners=False),
    i.e. the Deformable-DETR CUDA kernel.
    """
    Wf = jnp.asarray(input_shapes[:, 0], jnp.float32)[None, None, None, :, None]
    Hf = jnp.asarray(input_shapes[:, 1], jnp.float32)[None, None, None, :, None]
    Wi = jnp.asarray(input_shapes[:, 0], jnp.int32)[None, None, None, :, None]
    Hi = jnp.asarray(input_shapes[:, 1], jnp.int32)[None, None, None, :, None]
    start = jnp.asarray(level_start, jnp.int32)[None, None, None, :, None]

    x = sampling_locations[..., 0] * Wf - 0.5
    y = sampling_locations[..., 1] * Hf - 0.5
    x0 = jnp.floor(x)
    y0 = jnp.floor(y)
    lx = x - x0
    ly = y - y0
    x0i = x0.astype(jnp.int32)
    y0i = y0.astype(jnp.int32)

    idx_list, w_list = [], []
    for dy, dx in ((0, 0), (0, 1), (1, 0), (1, 1)):
        xc = x0i + dx
        yc = y0i + dy
        wx = lx if dx == 1 else (1.0 - lx)
        wy = ly if dy == 1 else (1.0 - ly)
        valid = ((xc >= 0) & (xc < Wi) & (yc >= 0) & (yc < Hi)).astype(jnp.float32)
        xcc = jnp.clip(xc, 0, Wi - 1)
        ycc = jnp.clip(yc, 0, Hi - 1)
        idx_list.append(start + ycc * Wi + xcc)
        w_list.append(attention_weights * wx * wy * valid)

    idx6 = jnp.stack(idx_list, axis=-1).astype(jnp.int32)   # [B, Lq, nh, L, P, 4]
    w6 = jnp.stack(w_list, axis=-1).astype(jnp.float32)
    return idx6, w6


def _pad_value_levels(value, level_sizes, padded_sizes):
    """value: [B, Lv, C] -> [B, Lv_pad, C] with each level zero-padded to a tile multiple."""
    pieces = []
    off = 0
    for ls, ps in zip(level_sizes, padded_sizes):
        chunk = value[:, off:off + ls]
        if ps > ls:
            chunk = jnp.pad(chunk, ((0, 0), (0, ps - ls), (0, 0)))
        pieces.append(chunk)
        off += ls
    return pieces[0] if len(pieces) == 1 else jnp.concatenate(pieces, axis=1)


# ---------------------------------------------------------------------------
# Parameters (deterministic init mirroring MSDeformAttn._reset_parameters)
# ---------------------------------------------------------------------------

def init_params(key, d_model, n_levels, n_heads, n_points):
    k1, k2 = jax.random.split(key)

    def xavier_uniform(k, fan_in, fan_out):
        a = math.sqrt(6.0 / (fan_in + fan_out))
        return jax.random.uniform(k, (fan_in, fan_out), jnp.float32, -a, a)

    thetas = jnp.arange(n_heads, dtype=jnp.float32) * (2.0 * math.pi / n_heads)
    grid_init = jnp.stack([jnp.cos(thetas), jnp.sin(thetas)], -1)                  # [nh, 2]
    grid_init = grid_init / jnp.max(jnp.abs(grid_init), axis=-1, keepdims=True)
    grid_init = jnp.tile(grid_init[:, None, None, :], (1, n_levels, n_points, 1))  # [nh, L, P, 2]
    grid_init = grid_init * jnp.arange(1, n_points + 1, dtype=jnp.float32)[None, None, :, None]

    return dict(
        W_so=jnp.zeros((d_model, n_heads * n_levels * n_points * 2), jnp.float32),
        b_so=grid_init.reshape(-1),
        W_aw=jnp.zeros((d_model, n_heads * n_levels * n_points), jnp.float32),
        b_aw=jnp.zeros((n_heads * n_levels * n_points,), jnp.float32),
        W_v=xavier_uniform(k1, d_model, d_model),
        b_v=jnp.zeros((d_model,), jnp.float32),
        W_o=xavier_uniform(k2, d_model, d_model),
        b_o=jnp.zeros((d_model,), jnp.float32),
    )


# ---------------------------------------------------------------------------
# Forward pass (Pallas-backed)
# ---------------------------------------------------------------------------

def ms_deform_attn_forward(params, query, ref_points, value, indices, input_shapes,
                           n_levels, n_heads, n_points, *,
                           compute_dtype=jnp.bfloat16,
                           tile_rows=512, tile_lq=256, tile_lv=256):
    b, t1, p, c = query.shape
    bt2, Lv, _ = value.shape
    t2 = bt2 // b
    t3 = t1 // t2
    Lq = t3 * p
    d_head = c // n_heads
    lp = n_levels * n_points
    p4 = n_points * 4

    shapes_np = np.asarray(input_shapes)
    level_sizes = [int(w_ * h_) for (w_, h_) in shapes_np]
    assert sum(level_sizes) == Lv

    # 'b (t2 t3) p c -> (b t2) (t3 p) c'  (pure reshape)
    q2d = query.reshape(bt2 * Lq, c)

    # ---- value projection (row-tiled linear); emits f32 new_value AND the bf16 core operand ----
    new_value, value_lo = linear_dual_pallas(
        value.reshape(bt2 * Lv, c), params["W_v"], params["b_v"],
        compute_dtype=compute_dtype, tile_rows=tile_rows)
    new_value = new_value.reshape(bt2, Lv, c)
    value_lo = value_lo.reshape(bt2, Lv, c)

    # ---- fused sampling-offset / attention-weight projection + per-head softmax ----
    so, aw = qproj_pallas(q2d, params["W_so"], params["b_so"], params["W_aw"], params["b_aw"],
                          n_heads=n_heads, lp=lp,
                          compute_dtype=compute_dtype, tile_rows=tile_rows)
    so = so.reshape(bt2, Lq, n_heads, n_levels, n_points, 2)
    aw = aw.reshape(bt2, Lq, n_heads, n_levels, n_points)

    offset_normalizer = jnp.asarray(shapes_np, jnp.float32)[None, None, None, :, None, :]
    so = so / offset_normalizer
    sampling_locations = ref_points[:, :, None, :, None, :] + so   # [bt2, Lq, nh, L, P, 2]

    # ---- per-level padded value layout for the Lv-tiled core (done in compute_dtype) ----
    tile_lv = max(16, (int(tile_lv) // 16) * 16)                   # bf16 sublane tiling
    padded_sizes = [int(pl.cdiv(s, tile_lv) * tile_lv) for s in level_sizes]
    padded_starts = np.concatenate([[0], np.cumsum(padded_sizes)[:-1]]).astype(np.int64)
    tiles_per_level = [ps // tile_lv for ps in padded_sizes]
    tile_level = np.repeat(np.arange(n_levels, dtype=np.int32), tiles_per_level)

    value_for_core = _pad_value_levels(value_lo, level_sizes, padded_sizes)

    # corner indices in the PADDED value layout; `indices` is assumed consistent with
    # input_shapes (unpadded cumulative level sizes), as documented by the module.
    idx6, w6 = _bilinear_corner_plan(sampling_locations, aw, shapes_np, padded_starts)
    # [B, Lq, nh, L, P, 4] -> [B, L, Lq, nh*P*4]  (lane-dense trailing dim, level on a leading dim)
    kh = n_heads * p4
    idx_k = jnp.transpose(idx6, (0, 3, 1, 2, 4, 5)).reshape(bt2, n_levels, Lq, kh)
    w_k = jnp.transpose(w6, (0, 3, 1, 2, 4, 5)).reshape(bt2, n_levels, Lq, kh)
    w_k = w_k.astype(compute_dtype)        # halves the largest core input stream

    # ---- pad Lq to a multiple of the Lq tile ----
    tq = _pick_row_tile(Lq, tile_lq)
    n_lq_tiles = pl.cdiv(Lq, tq)
    lq_pad = n_lq_tiles * tq
    if lq_pad != Lq:
        pad = lq_pad - Lq
        idx_k = jnp.pad(idx_k, ((0, 0), (0, 0), (0, pad), (0, 0)))
        w_k = jnp.pad(w_k, ((0, 0), (0, 0), (0, pad), (0, 0)))

    core = deform_core_pallas(tile_level, value_for_core, idx_k, w_k,
                              n_heads=n_heads, d_head=d_head, p4=p4,
                              tile_lv=tile_lv, tq=tq, compute_dtype=compute_dtype)
    core = core[:, :Lq, :]

    # ---- output projection ----
    out = linear_pallas(core.reshape(bt2 * Lq, c), params["W_o"], params["b_o"],
                        compute_dtype=compute_dtype, tile_rows=tile_rows).reshape(bt2, Lq, c)
    out = out.reshape(b, t1, p, c)
    return out, new_value


# ---------------------------------------------------------------------------
# Pure-JAX reference (for correctness check).  compute_dtype=float32 -> exact f32 semantics;
# compute_dtype=bfloat16 -> emulates the kernels' bf16-input / f32-accumulate matmuls.
# ---------------------------------------------------------------------------

def reference_forward(params, query, ref_points, value, indices, input_shapes,
                      n_levels, n_heads, n_points, compute_dtype=jnp.float32):
    def mm(x, w):
        if compute_dtype == jnp.float32:
            return jnp.dot(x, w, preferred_element_type=jnp.float32,
                           precision=lax.Precision.HIGHEST)
        return jnp.dot(x.astype(compute_dtype), w.astype(compute_dtype),
                       preferred_element_type=jnp.float32)

    b, t1, p, c = query.shape
    bt2, Lv, _ = value.shape
    t2 = bt2 // b
    t3 = t1 // t2
    Lq = t3 * p
    d_head = c // n_heads

    q = query.reshape(bt2, Lq, c)
    new_value = (mm(value.reshape(-1, c), params["W_v"]) + params["b_v"]).reshape(bt2, Lv, c)
    so = (mm(q.reshape(-1, c), params["W_so"]) + params["b_so"]
          ).reshape(bt2, Lq, n_heads, n_levels, n_points, 2)
    logits = (mm(q.reshape(-1, c), params["W_aw"]) + params["b_aw"]
              ).reshape(bt2, Lq, n_heads, n_levels * n_points)
    aw = jax.nn.softmax(logits, axis=-1).reshape(bt2, Lq, n_heads, n_levels, n_points)
    so = so / jnp.asarray(input_shapes, jnp.float32)[None, None, None, :, None, :]
    loc = ref_points[:, :, None, :, None, :] + so

    idx6, w6 = _bilinear_corner_plan(loc, aw, np.asarray(input_shapes), np.asarray(indices))
    K = n_levels * n_points * 4
    idx = idx6.reshape(bt2, Lq, n_heads, K)
    w = w6.reshape(bt2, Lq, n_heads, K)

    val4 = new_value.reshape(bt2, Lv, n_heads, d_head)
    cores = []
    for bi in range(bt2):
        heads = []
        for m in range(n_heads):
            vm = val4[bi, :, m, :].astype(compute_dtype).astype(jnp.float32)   # [Lv, dh]
            gm = vm[idx[bi, :, m, :]]                                          # [Lq, K, dh]
            wm = w[bi, :, m, :].astype(compute_dtype).astype(jnp.float32)      # [Lq, K]
            heads.append(jnp.einsum("qk,qkd->qd", wm, gm,
                                    precision=lax.Precision.HIGHEST))
        cores.append(jnp.concatenate(heads, -1))
    core = jnp.stack(cores, 0)
    out = (mm(core.reshape(-1, c), params["W_o"]) + params["b_o"]).reshape(bt2, Lq, c)
    return out.reshape(b, t1, p, c), new_value


# ---------------------------------------------------------------------------

if __name__ == "__main__":
    # Small config consistent with the module (d_model % n_heads == 0, d_head a power of 2).
    d_model, n_levels, n_heads, n_points = 32, 2, 4, 2
    b, t2, t3, p = 1, 2, 2, 8
    t1 = t2 * t3
    bt2 = b * t2
    Lq = t3 * p

    input_shapes = np.array([[8, 4], [4, 2]], dtype=np.int64)      # (W_l, H_l)
    level_sizes = input_shapes[:, 0] * input_shapes[:, 1]
    indices = np.concatenate([[0], np.cumsum(level_sizes)[:-1]]).astype(np.int64)
    Lv = int(level_sizes.sum())

    key = jax.random.PRNGKey(0)
    kq, kr, kv, kp, k1, k2 = jax.random.split(key, 6)
    query = jax.random.normal(kq, (b, t1, p, d_model), jnp.float32)
    ref_points = jax.random.uniform(kr, (bt2, Lq, n_levels, 2), jnp.float32)
    value = jax.random.normal(kv, (bt2, Lv, d_model), jnp.float32)

    params = init_params(kp, d_model, n_levels, n_heads, n_points)
    # Perturb the (zero-initialised) offset / attention-weight projections so the test
    # exercises query-dependent sampling locations and a non-trivial softmax.
    params["W_so"] = 0.05 * jax.random.normal(k1, params["W_so"].shape, jnp.float32)
    params["W_aw"] = 0.10 * jax.random.normal(k2, params["W_aw"].shape, jnp.float32)

    out, new_value = ms_deform_attn_forward(
        params, query, ref_points, value, indices, input_shapes,
        n_levels, n_heads, n_points,
        compute_dtype=jnp.bfloat16,
        tile_rows=256, tile_lq=8, tile_lv=16)   # small tiles -> multiple Lq and Lv grid steps
    out = jax.block_until_ready(out)
    new_value = jax.block_until_ready(new_value)

    # Matched-precision reference (emulates bf16 MXU inputs) -> tight check.
    ref_out_b, ref_nv_b = reference_forward(params, query, ref_points, value, indices,
                                            input_shapes, n_levels, n_heads, n_points,
                                            compute_dtype=jnp.bfloat16)
    # Full-f32 reference -> sanity check that bf16 compute stays accurate.
    ref_out_f, ref_nv_f = reference_forward(params, query, ref_points, value, indices,
                                            input_shapes, n_levels, n_heads, n_points,
                                            compute_dtype=jnp.float32)

    assert out.shape == (b, t1, p, d_model)
    assert new_value.shape == (bt2, Lv, d_model)
    assert bool(jnp.allclose(out, ref_out_b, atol=1e-2, rtol=1e-2))
    assert bool(jnp.allclose(new_value, ref_nv_b, atol=1e-2, rtol=1e-2))
    assert bool(jnp.allclose(out, ref_out_f, atol=5e-2, rtol=5e-2))
    assert bool(jnp.allclose(new_value, ref_nv_f, atol=5e-2, rtol=5e-2))
    print("KERNEL_OK")
</pallas_src>

<mosaic_0001>
module attributes {stable_mosaic.version = 11 : i64} {
  func.func @_linear_dual_kernel(%arg0: i32, %arg1: memref<80x32xf32, #tpu.memory_space<vmem>>, %arg2: memref<32x32xbf16, #tpu.memory_space<vmem>>, %arg3: memref<1x32xf32, #tpu.memory_space<vmem>>, %arg4: memref<80x32xf32, #tpu.memory_space<vmem>>, %arg5: memref<80x32xbf16, #tpu.memory_space<vmem>>) attributes {dimension_semantics = [#tpu.dimension_semantics<parallel>], iteration_bounds = array<i64: 1>, scalar_prefetch = 0 : i64, scratch_operands = 0 : i64, tpu.core_type = #tpu.core_type<tc>, window_params = [{transform_indices = @transform_0, window_bounds = array<i64: 80, 32>}, {pipeline_mode = #tpu.pipeline_mode<synchronous>, transform_indices = @transform_1, window_bounds = array<i64: 32, 32>}, {pipeline_mode = #tpu.pipeline_mode<synchronous>, transform_indices = @transform_2, window_bounds = array<i64: 1, 32>}, {transform_indices = @transform_3, window_bounds = array<i64: 80, 32>}, {transform_indices = @transform_4, window_bounds = array<i64: 80, 32>}]} {
    %c0 = arith.constant 0 : index
    %c0_0 = arith.constant 0 : index
    %0 = vector.load %arg1[%c0, %c0_0] : memref<80x32xf32, #tpu.memory_space<vmem>>, vector<80x32xf32>
    %1 = arith.truncf %0 : vector<80x32xf32> to vector<80x32xbf16>
    %c0_1 = arith.constant 0 : index
    %c0_2 = arith.constant 0 : index
    %2 = vector.load %arg2[%c0_1, %c0_2] : memref<32x32xbf16, #tpu.memory_space<vmem>>, vector<32x32xbf16>
    %cst = arith.constant dense<0.000000e+00> : vector<80x32xf32>
    %3 = tpu.matmul %1, %2, %cst {dimension_numbers = #tpu.dot_dimension_numbers<[1], [0], [0], [1], [0, 0, 1, 1], [], []>} : vector<80x32xbf16>, vector<32x32xbf16>, vector<80x32xf32> -> vector<80x32xf32>
    %c0_3 = arith.constant 0 : index
    %c0_4 = arith.constant 0 : index
    %4 = vector.load %arg3[%c0_3, %c0_4] : memref<1x32xf32, #tpu.memory_space<vmem>>, vector<1x32xf32>
    %5 = vector.broadcast %4 : vector<1x32xf32> to vector<80x32xf32>
    %6 = arith.addf %3, %5 : vector<80x32xf32>
    %c0_5 = arith.constant 0 : index
    %c0_6 = arith.constant 0 : index
    %7 = vector.load %arg4[%c0_5, %c0_6] : memref<80x32xf32, #tpu.memory_space<vmem>>, vector<80x32xf32>
    tpu.vector_store %arg4[%c0_5, %c0_6], %6 {strides = array<i32>} : memref<80x32xf32, #tpu.memory_space<vmem>>, vector<80x32xf32>,
    %8 = arith.truncf %6 : vector<80x32xf32> to vector<80x32xbf16>
    %c0_7 = arith.constant 0 : index
    %c0_8 = arith.constant 0 : index
    %9 = vector.load %arg5[%c0_7, %c0_8] : memref<80x32xbf16, #tpu.memory_space<vmem>>, vector<80x32xbf16>
    tpu.vector_store %arg5[%c0_7, %c0_8], %8 {strides = array<i32>} : memref<80x32xbf16, #tpu.memory_space<vmem>>, vector<80x32xbf16>,
    return
  }
  func.func @transform_0(%arg0: i32) -> (i32, i32) {
    %c0_i32 = arith.constant 0 : i32
    %c0_i32_0 = arith.constant 0 : i32
    return %arg0, %c0_i32 : i32, i32
  }
  func.func @transform_1(%arg0: i32) -> (i32, i32) {
    %c0_i32 = arith.constant 0 : i32
    %c0_i32_0 = arith.constant 0 : i32
    %c0_i32_1 = arith.constant 0 : i32
    return %c0_i32, %c0_i32_0 : i32, i32
  }
  func.func @transform_2(%arg0: i32) -> (i32, i32) {
    %c0_i32 = arith.constant 0 : i32
    %c0_i32_0 = arith.constant 0 : i32
    %c0_i32_1 = arith.constant 0 : i32
    return %c0_i32, %c0_i32_0 : i32, i32
  }
  func.func @transform_3(%arg0: i32) -> (i32, i32) {
    %c0_i32 = arith.constant 0 : i32
    %c0_i32_0 = arith.constant 0 : i32
    return %arg0, %c0_i32 : i32, i32
  }
  func.func @transform_4(%arg0: i32) -> (i32, i32) {
    %c0_i32 = arith.constant 0 : i32
    %c0_i32_0 = arith.constant 0 : i32
    return %arg0, %c0_i32 : i32, i32
  }
}

</mosaic_0001>

<llo_original>
// kernel: tpu_custom_call.1
$region0: #{tpu_custom_call.1}
  #allocation0 [shape = 'u32[]', space=smem, size = 0x4, offset = 0x4, fixed_abs, tag = 'smem constant byte address 0x4 - core index']
  #allocation1 [shape = 'u32[144,128]{1,0:T(1,128)}', space=vmem, size = 0x12000, scoped, tag = 'internal scratch']
  %s0 = inlined_call_operand.vmem [shape: f32[80,32], index: 0, kind: input, shape index: {}]
  %s1 = inlined_call_operand.vmem [shape: bf16[32,32], index: 1, kind: input, shape index: {}]
  %s2 = inlined_call_operand.vmem [shape: f32[1,32], index: 2, kind: input, shape index: {}]
  %s3 = inlined_call_operand.vmem [shape: f32[80,32], index: 3, kind: output, shape index: {0}]
  %s4 = inlined_call_operand.vmem [shape: bf16[80,32], index: 4, kind: output, shape index: {1}]
  %5 = xla_tuple %s3, %s4
  %s6 = sld [smem:[#allocation0]]
  $region30: #{tpu_custom_call.1} parent=0
    _
  %s8 = ssub.s32 1, %s6
  %s9 = scalar_select 0, %s8, %s6
  // Predicated region
  $region2: #{tpu_custom_call.1} parent=0 // pred_check
    _
  $region3: #{tpu_custom_call.1} parent=0 // pred_check_branch
    %11 = sbr.rel (0) target = $region5
  $region4: #{tpu_custom_call.1} parent=0 // pred_region
    _
  $region5: #{tpu_custom_call.1} parent=0 // pred_fallthru
    _
  // Predicated region
  $region6: #{tpu_custom_call.1} parent=0 // pred_check
    _
  $region7: #{tpu_custom_call.1} parent=0 // pred_check_branch
    %13 = sbr.rel (0) target = $region9
  $region8: #{tpu_custom_call.1} parent=0 // pred_region
    _
  $region9: #{tpu_custom_call.1} parent=0 // pred_fallthru
    _
  // Predicated region
  $region10: #{tpu_custom_call.1} parent=0 // pred_check
    _
  $region11: #{tpu_custom_call.1} parent=0 // pred_check_branch
    %15 = sbr.rel (0) target = $region13
  $region12: #{tpu_custom_call.1} parent=0 // pred_region
    _
  $region13: #{tpu_custom_call.1} parent=0 // pred_fallthru
    _
  %v17 = vld [vmem:[%s0] sm:$0xff]
  %v18 = vld [vmem:[%s0 + $0x8] sm:$0xff]
  %v19 = vld [vmem:[%s0 + $0x10] sm:$0xff]
  %v20 = vld [vmem:[%s0 + $0x18] sm:$0xff]
  %v21 = vld [vmem:[%s0 + $0x20] sm:$0xff]
  %v22 = vld [vmem:[%s0 + $0x28] sm:$0xff]
  %v23 = vld [vmem:[%s0 + $0x30] sm:$0xff]
  %v24 = vld [vmem:[%s0 + $0x38] sm:$0xff]
  %v25 = vld [vmem:[%s0 + $0x40] sm:$0xff]
  %v26 = vld [vmem:[%s0 + $0x48] sm:$0xff]
  %v27 = vpack.c.bf16 %v18, %v17
  %v28 = vpack.c.bf16 %v20, %v19
  %v29 = vpack.c.bf16 %v22, %v21
  %v30 = vpack.c.bf16 %v24, %v23
  %v31 = vpack.c.bf16 %v26, %v25
  %v32 = vld [vmem:[%s1] sm:$0xf]
  %v33 = vld [vmem:[%s1 + $0x4] sm:$0xf]
  %v34 = vld [vmem:[%s1 + $0x8] sm:$0xf]
  %v35 = vld [vmem:[%s1 + $0xc] sm:$0xf]
  %v36 = vld [vmem:[%s2] sm:$0x1]
  %v38 = vlaneseq
  %v39 = vshrl.u32 %v38, 7
  %v40 = vsub.s32 0, %v39
  %v41 = vrot.slane %v36, %v40
  %v47 = vunpack.c.l.b16 %v32
  %v48 = vunpack.c.l.b16 %v33
  %v49 = vunpack.c.l.b16 %v34
  %v50 = vunpack.c.l.b16 %v35
  %v51 = vpack.c.b16 %v48, %v47
  %v52 = vpack.c.b16 %v50, %v49
  %vm55 = vcmask 261120
  %v57 = vsel %vm55, %v27, 0
  %v60 = vsel %vm55, %v28, 0
  %v63 = vsel %vm55, %v29, 0
  %v66 = vsel %vm55, %v30, 0
  %v69 = vsel %vm55, %v31, 0
  %71 = vmatprep.subr.bf16.mxu0 0
  %72 = vmatpush1.bf16.msra.mxu0 0
  %73 = vmatprep.subr.bf16.mxu0 0
  %74 = vmatpush1.bf16.msra.mxu0 0
  %75 = vmatprep.subr.bf16.mxu0 0
  %76 = vmatpush1.bf16.msra.mxu0 0
  %77 = vmatprep.subr.bf16.mxu0 0
  %78 = vmatpush1.bf16.msra.mxu0 0
  %79 = vmatprep.subr.bf16.mxu0 0
  %80 = vmatpush1.bf16.msra.mxu0 0
  %81 = vmatprep.subr.bf16.mxu0 0
  %82 = vmatpush1.bf16.msra.mxu0 0
  %83 = vmatprep.subr.bf16.mxu0 0
  %84 = vmatpush1.bf16.msra.mxu0 %v52
  %85 = vmatprep.subr.bf16.mxu0 0
  %86 = vmatpush1.bf16.msra.mxu0 %v51
  %87 = vmatprep.subr.bf16.mxu0 0
  %88 = vmatpush2.bf16.msra.mxu0 0
  %89 = vmatprep.subr.bf16.mxu0 0
  %90 = vmatpush2.bf16.msra.mxu0 0
  %91 = vmatprep.subr.bf16.mxu0 0
  %92 = vmatpush2.bf16.msra.mxu0 0
  %93 = vmatprep.subr.bf16.mxu0 0
  %94 = vmatpush2.bf16.msra.mxu0 0
  %95 = vmatprep.subr.bf16.mxu0 0
  %96 = vmatpush2.bf16.msra.mxu0 0
  %97 = vmatprep.subr.bf16.mxu0 0
  %98 = vmatpush2.bf16.msra.mxu0 0
  %99 = vmatprep.subr.bf16.mxu0 0
  %100 = vmatpush2.bf16.msra.mxu0 0
  %101 = vmatprep.subr.bf16.mxu0 0
  %102 = vmatpush2.bf16.msra.mxu0 0
  %103 = vmatprep.mubr.bf16.mxu0 0
  %104 = vmatmul.mubr.bf16.gmra.mxu0 %v57
  %v105 = vpop.f32.mrf.mxu0
  %v106 = vadd.f32 %v41, %v105
  %v107 = vpop.f32.mrf.mxu0
  %v108 = vpop.f32.mrf.mxu0
  %v109 = vadd.f32 %v41, %v108
  %v110 = vpop.f32.mrf.mxu0
  %111 = vmatprep.mubr.bf16.mxu0 0
  %112 = vmatmul.mubr.bf16.gmra.mxu0 %v60
  %v113 = vpop.f32.mrf.mxu0
  %v114 = vadd.f32 %v41, %v113
  %v115 = vpop.f32.mrf.mxu0
  %v116 = vpop.f32.mrf.mxu0
  %v117 = vadd.f32 %v41, %v116
  %v118 = vpop.f32.mrf.mxu0
  %119 = vmatprep.mubr.bf16.mxu0 0
  %120 = vmatmul.mubr.bf16.gmra.mxu0 %v63
  %v121 = vpop.f32.mrf.mxu0
  %v122 = vadd.f32 %v41, %v121
  %v123 = vpop.f32.mrf.mxu0
  %v124 = vpop.f32.mrf.mxu0
  %v125 = vadd.f32 %v41, %v124
  %v126 = vpop.f32.mrf.mxu0
  %127 = vmatprep.mubr.bf16.mxu0 0
  %128 = vmatmul.mubr.bf16.gmra.mxu0 %v66
  %v129 = vpop.f32.mrf.mxu0
  %v130 = vadd.f32 %v41, %v129
  %v131 = vpop.f32.mrf.mxu0
  %v132 = vpop.f32.mrf.mxu0
  %v133 = vadd.f32 %v41, %v132
  %v134 = vpop.f32.mrf.mxu0
  %135 = vmatprep.mubr.bf16.mxu0 0
  %136 = vmatmul.mubr.bf16.gmra.mxu0 %v69
  %v137 = vpop.f32.mrf.mxu0
  %v138 = vadd.f32 %v41, %v137
  %v139 = vpop.f32.mrf.mxu0
  %v140 = vpop.f32.mrf.mxu0
  %v141 = vadd.f32 %v41, %v140
  %v142 = vpop.f32.mrf.mxu0
  %143 = vdwg.mxu0
  %144 = vst.msk [vmem:[%s3] sm:$0xff] %vm55, %v106
  %145 = vst.msk [vmem:[%s3 + $0x8] sm:$0xff] %vm55, %v109
  %146 = vst.msk [vmem:[%s3 + $0x10] sm:$0xff] %vm55, %v114
  %147 = vst.msk [vmem:[%s3 + $0x18] sm:$0xff] %vm55, %v117
  %148 = vst.msk [vmem:[%s3 + $0x20] sm:$0xff] %vm55, %v122
  %149 = vst.msk [vmem:[%s3 + $0x28] sm:$0xff] %vm55, %v125
  %150 = vst.msk [vmem:[%s3 + $0x30] sm:$0xff] %vm55, %v130
  %151 = vst.msk [vmem:[%s3 + $0x38] sm:$0xff] %vm55, %v133
  %152 = vst.msk [vmem:[%s3 + $0x40] sm:$0xff] %vm55, %v138
  %153 = vst.msk [vmem:[%s3 + $0x48] sm:$0xff] %vm55, %v141
  %v154 = vpack.c.bf16 %v109, %v106
  %v155 = vpack.c.bf16 %v117, %v114
  %v156 = vpack.c.bf16 %v125, %v122
  %v157 = vpack.c.bf16 %v133, %v130
  %v158 = vpack.c.bf16 %v141, %v138
  %v164 = vunpack.c.l.b16 %v154
  %v165 = vunpack.c.h.b16 %v154
  %v166 = vunpack.c.l.b16 %v155
  %v167 = vunpack.c.h.b16 %v155
  %v168 = vunpack.c.l.b16 %v156
  %v169 = vunpack.c.h.b16 %v156
  %v170 = vunpack.c.l.b16 %v157
  %v171 = vunpack.c.h.b16 %v157
  %v172 = vunpack.c.l.b16 %v158
  %v173 = vunpack.c.h.b16 %v158
  %v174 = vpack.c.b16 %v164, %v164
  %v175 = vpack.c.b16 %v165, %v165
  %v176 = vpack.c.b16 %v166, %v166
  %v177 = vpack.c.b16 %v167, %v167
  %v178 = vpack.c.b16 %v168, %v168
  %v179 = vpack.c.b16 %v169, %v169
  %v180 = vpack.c.b16 %v170, %v170
  %v181 = vpack.c.b16 %v171, %v171
  %v182 = vpack.c.b16 %v172, %v172
  %v183 = vpack.c.b16 %v173, %v173
  %vm194 = vcmask 257024
  %195 = vst.msk [vmem:[%s4] sm:$0xf] %vm194, %v174
  %196 = vst.msk [vmem:[%s4 + $0x4] sm:$0xf] %vm194, %v175
  %197 = vst.msk [vmem:[%s4 + $0x8] sm:$0xf] %vm194, %v176
  %198 = vst.msk [vmem:[%s4 + $0xc] sm:$0xf] %vm194, %v177
  %199 = vst.msk [vmem:[%s4 + $0x10] sm:$0xf] %vm194, %v178
  %200 = vst.msk [vmem:[%s4 + $0x14] sm:$0xf] %vm194, %v179
  %201 = vst.msk [vmem:[%s4 + $0x18] sm:$0xf] %vm194, %v180
  %202 = vst.msk [vmem:[%s4 + $0x1c] sm:$0xf] %vm194, %v181
  %203 = vst.msk [vmem:[%s4 + $0x20] sm:$0xf] %vm194, %v182
  %204 = vst.msk [vmem:[%s4 + $0x24] sm:$0xf] %vm194, %v183
  // Predicated region
  $region14: #{tpu_custom_call.1} parent=0 // pred_check
    _
  $region15: #{tpu_custom_call.1} parent=0 // pred_check_branch
    %206 = sbr.rel (0) target = $region17
  $region16: #{tpu_custom_call.1} parent=0 // pred_region
    _
  $region17: #{tpu_custom_call.1} parent=0 // pred_fallthru
    _
  // Predicated region
  $region18: #{tpu_custom_call.1} parent=0 // pred_check
    _
  $region19: #{tpu_custom_call.1} parent=0 // pred_check_branch
    %208 = sbr.rel (0) target = $region21
  $region20: #{tpu_custom_call.1} parent=0 // pred_region
    _
  $region21: #{tpu_custom_call.1} parent=0 // pred_fallthru
    _
  // Predicated region
  $region22: #{tpu_custom_call.1} parent=0 // pred_check
    _
  $region23: #{tpu_custom_call.1} parent=0 // pred_check_branch
    %210 = sbr.rel (0) target = $region25
  $region24: #{tpu_custom_call.1} parent=0 // pred_region
    _
  $region25: #{tpu_custom_call.1} parent=0 // pred_fallthru
    _
  // Predicated region
  $region26: #{tpu_custom_call.1} parent=0 // pred_check
    _
  $region27: #{tpu_custom_call.1} parent=0 // pred_check_branch
    %212 = sbr.rel (0) target = $region29
  $region28: #{tpu_custom_call.1} parent=0 // pred_region
    _
  $region29: #{tpu_custom_call.1} parent=0 // pred_fallthru
    _

</llo_original>
